<compile_context>
chip_gen: v5e
topology: v5e:2x2
jax: 0.10.0
libtpu: 0.0.40
codegen_flags: <defaults>
</compile_context>

<pallas_src>
import jax
import jax.numpy as jnp
from jax.experimental import pallas as pl
from jax.experimental.pallas import tpu as pltpu


def _round_up(x, m):
    return ((x + m - 1) // m) * m


def mlp_kernel(x_ref, w1_ref, b1_ref, w2_ref, b2_ref, q_ref):
    # hidden = relu(x @ W1 + b1); single bias broadcast per tile, f32 accumulate.
    h = jnp.dot(x_ref[...], w1_ref[...], preferred_element_type=jnp.float32)
    h = jnp.maximum(h + b1_ref[...], 0.0)
    # q = hidden @ W2 + b2; output tile is lane-dense (128 padded columns).
    q = jnp.dot(h, w2_ref[...], preferred_element_type=jnp.float32) + b2_ref[...]
    q_ref[...] = q.astype(q_ref.dtype)


def network_forward(state, params, *, block_batch=512):
    """Pallas equivalent of Network.forward(state). state: [batch, input_size]."""
    w1p, b1p, w2p, b2p = params["w1p"], params["b1p"], params["w2p"], params["b2p"]
    out_features = params["out_features"]

    batch, k = state.shape
    kp = w1p.shape[0]   # padded input features (multiple of 8)
    hp = w1p.shape[1]   # padded hidden width (128)
    op = w2p.shape[1]   # padded output width (128) -> unmasked stores

    # Pad input features once (matching W1 rows are zero, so result is exact).
    if k < kp:
        state = jnp.pad(state, ((0, 0), (0, kp - k)))

    # Batch tile: big tiles amortize per-grid-step overhead; small batches just
    # round up to the 8-row sublane quantum.
    tb = min(block_batch, _round_up(batch, 8))
    padded_batch = _round_up(batch, tb)
    if padded_batch != batch:
        state = jnp.pad(state, ((0, padded_batch - batch), (0, 0)))

    grid = (padded_batch // tb,)

    q_padded = pl.pallas_call(
        mlp_kernel,
        out_shape=jax.ShapeDtypeStruct((padded_batch, op), state.dtype),
        grid=grid,
        in_specs=[
            pl.BlockSpec((tb, kp), lambda i: (i, 0)),   # activations: tiled over batch
            pl.BlockSpec((kp, hp), lambda i: (0, 0)),   # W1: VMEM-resident
            pl.BlockSpec((1, hp), lambda i: (0, 0)),    # b1: VMEM-resident
            pl.BlockSpec((hp, op), lambda i: (0, 0)),   # W2: VMEM-resident
            pl.BlockSpec((1, op), lambda i: (0, 0)),    # b2: VMEM-resident
        ],
        out_specs=pl.BlockSpec((tb, op), lambda i: (i, 0)),
        compiler_params=pltpu.CompilerParams(
            dimension_semantics=("parallel",),  # shard batch tiles across TCs on v7x
        ),
    )(state, w1p, b1p, w2p, b2p)

    # Strip batch + lane padding outside the kernel (keeps module semantics).
    return q_padded[:batch, :out_features]


def init_params(key, input_size, hidden_size, output_size):
    """Deterministic init mimicking nn.Linear default U(-1/sqrt(fan_in), +1/sqrt(fan_in)).

    Weights are stored transposed vs. PyTorch (x @ W + b layout).
    """
    k1, k2, k3, k4 = jax.random.split(key, 4)
    bound1 = 1.0 / jnp.sqrt(jnp.float32(input_size))
    bound2 = 1.0 / jnp.sqrt(jnp.float32(hidden_size))
    w1 = jax.random.uniform(k1, (input_size, hidden_size), jnp.float32, -bound1, bound1)
    b1 = jax.random.uniform(k2, (1, hidden_size), jnp.float32, -bound1, bound1)
    w2 = jax.random.uniform(k3, (hidden_size, output_size), jnp.float32, -bound2, bound2)
    b2 = jax.random.uniform(k4, (1, output_size), jnp.float32, -bound2, bound2)
    return w1, b1, w2, b2


def pad_params(w1, b1, w2, b2):
    """One-time zero-padding of weights to TPU hardware tiles.

    W1: (K, H) -> (round8(K), 128); W2: (H, N) -> (128, 128); biases -> (1, 128).
    Zero padding preserves the exact forward math.
    """
    k, h = w1.shape
    n = w2.shape[1]
    kp = _round_up(k, 8)
    hp = _round_up(h, 128)
    op = _round_up(n, 128)
    w1p = jnp.zeros((kp, hp), w1.dtype).at[:k, :h].set(w1)
    b1p = jnp.zeros((1, hp), b1.dtype).at[:, :h].set(b1)
    w2p = jnp.zeros((hp, op), w2.dtype).at[:h, :n].set(w2)
    b2p = jnp.zeros((1, op), b2.dtype).at[:, :n].set(b2)
    return {"w1p": w1p, "b1p": b1p, "w2p": w2p, "b2p": b2p, "out_features": n}


if __name__ == "__main__":
    # Typical self-driving-car DQN sizes: 5 input signals, 30 hidden, 3 actions.
    # Modest batch with 2 grid steps to exercise the batch-tiled pipeline.
    batch, input_size, hidden_size, output_size = 128, 5, 30, 3
    block_batch = 64

    key = jax.random.PRNGKey(0)
    k_params, k_state = jax.random.split(key)
    w1, b1, w2, b2 = init_params(k_params, input_size, hidden_size, output_size)
    params = pad_params(w1, b1, w2, b2)
    state = jax.random.normal(k_state, (batch, input_size), jnp.float32)

    q_values = network_forward(state, params, block_batch=block_batch)
    q_values = jax.block_until_ready(q_values)

    # Pure-JAX reference (same math as the PyTorch forward), unpadded weights.
    ref = jnp.maximum(state @ w1 + b1, 0.0) @ w2 + b2
    assert q_values.shape == (batch, output_size)
    assert jnp.allclose(q_values, ref, atol=1e-5, rtol=1e-5)

    print("KERNEL_OK")
</pallas_src>

<mosaic_0001>
module attributes {stable_mosaic.version = 11 : i64} {
  func.func @mlp_kernel(%arg0: i32, %arg1: memref<64x8xf32, #tpu.memory_space<vmem>>, %arg2: memref<8x128xf32, #tpu.memory_space<vmem>>, %arg3: memref<1x128xf32, #tpu.memory_space<vmem>>, %arg4: memref<128x128xf32, #tpu.memory_space<vmem>>, %arg5: memref<1x128xf32, #tpu.memory_space<vmem>>, %arg6: memref<64x128xf32, #tpu.memory_space<vmem>>) attributes {dimension_semantics = [#tpu.dimension_semantics<parallel>], iteration_bounds = array<i64: 2>, scalar_prefetch = 0 : i64, scratch_operands = 0 : i64, tpu.core_type = #tpu.core_type<tc>, window_params = [{transform_indices = @transform_0, window_bounds = array<i64: 64, 8>}, {pipeline_mode = #tpu.pipeline_mode<synchronous>, transform_indices = @transform_1, window_bounds = array<i64: 8, 128>}, {pipeline_mode = #tpu.pipeline_mode<synchronous>, transform_indices = @transform_2, window_bounds = array<i64: 1, 128>}, {pipeline_mode = #tpu.pipeline_mode<synchronous>, transform_indices = @transform_3, window_bounds = array<i64: 128, 128>}, {pipeline_mode = #tpu.pipeline_mode<synchronous>, transform_indices = @transform_4, window_bounds = array<i64: 1, 128>}, {transform_indices = @transform_5, window_bounds = array<i64: 64, 128>}]} {
    %c0 = arith.constant 0 : index
    %c0_0 = arith.constant 0 : index
    %0 = vector.load %arg1[%c0, %c0_0] : memref<64x8xf32, #tpu.memory_space<vmem>>, vector<64x8xf32>
    %c0_1 = arith.constant 0 : index
    %c0_2 = arith.constant 0 : index
    %1 = vector.load %arg2[%c0_1, %c0_2] : memref<8x128xf32, #tpu.memory_space<vmem>>, vector<8x128xf32>
    %cst = arith.constant dense<0.000000e+00> : vector<64x128xf32>
    %2 = tpu.matmul %0, %1, %cst {dimension_numbers = #tpu.dot_dimension_numbers<[1], [0], [0], [1], [0, 0, 1, 1], [], []>} : vector<64x8xf32>, vector<8x128xf32>, vector<64x128xf32> -> vector<64x128xf32>
    %c0_3 = arith.constant 0 : index
    %c0_4 = arith.constant 0 : index
    %3 = vector.load %arg3[%c0_3, %c0_4] : memref<1x128xf32, #tpu.memory_space<vmem>>, vector<1x128xf32>
    %4 = vector.broadcast %3 : vector<1x128xf32> to vector<64x128xf32>
    %5 = arith.addf %2, %4 : vector<64x128xf32>
    %cst_5 = arith.constant 0.000000e+00 : f32
    %6 = vector.broadcast %cst_5 : f32 to vector<64x128xf32>
    %7 = arith.maximumf %5, %6 : vector<64x128xf32>
    %c0_6 = arith.constant 0 : index
    %c0_7 = arith.constant 0 : index
    %8 = vector.load %arg4[%c0_6, %c0_7] : memref<128x128xf32, #tpu.memory_space<vmem>>, vector<128x128xf32>
    %cst_8 = arith.constant dense<0.000000e+00> : vector<64x128xf32>
    %9 = tpu.matmul %7, %8, %cst_8 {dimension_numbers = #tpu.dot_dimension_numbers<[1], [0], [0], [1], [0, 0, 1, 1], [], []>} : vector<64x128xf32>, vector<128x128xf32>, vector<64x128xf32> -> vector<64x128xf32>
    %c0_9 = arith.constant 0 : index
    %c0_10 = arith.constant 0 : index
    %10 = vector.load %arg5[%c0_9, %c0_10] : memref<1x128xf32, #tpu.memory_space<vmem>>, vector<1x128xf32>
    %11 = vector.broadcast %10 : vector<1x128xf32> to vector<64x128xf32>
    %12 = arith.addf %9, %11 : vector<64x128xf32>
    %c0_11 = arith.constant 0 : index
    %c0_12 = arith.constant 0 : index
    %13 = vector.load %arg6[%c0_11, %c0_12] : memref<64x128xf32, #tpu.memory_space<vmem>>, vector<64x128xf32>
    tpu.vector_store %arg6[%c0_11, %c0_12], %12 {strides = array<i32>} : memref<64x128xf32, #tpu.memory_space<vmem>>, vector<64x128xf32>,
    return
  }
  func.func @transform_0(%arg0: i32) -> (i32, i32) {
    %c0_i32 = arith.constant 0 : i32
    %c0_i32_0 = arith.constant 0 : i32
    return %arg0, %c0_i32 : i32, i32
  }
  func.func @transform_1(%arg0: i32) -> (i32, i32) {
    %c0_i32 = arith.constant 0 : i32
    %c0_i32_0 = arith.constant 0 : i32
    %c0_i32_1 = arith.constant 0 : i32
    return %c0_i32, %c0_i32_0 : i32, i32
  }
  func.func @transform_2(%arg0: i32) -> (i32, i32) {
    %c0_i32 = arith.constant 0 : i32
    %c0_i32_0 = arith.constant 0 : i32
    %c0_i32_1 = arith.constant 0 : i32
    return %c0_i32, %c0_i32_0 : i32, i32
  }
  func.func @transform_3(%arg0: i32) -> (i32, i32) {
    %c0_i32 = arith.constant 0 : i32
    %c0_i32_0 = arith.constant 0 : i32
    %c0_i32_1 = arith.constant 0 : i32
    return %c0_i32, %c0_i32_0 : i32, i32
  }
  func.func @transform_4(%arg0: i32) -> (i32, i32) {
    %c0_i32 = arith.constant 0 : i32
    %c0_i32_0 = arith.constant 0 : i32
    %c0_i32_1 = arith.constant 0 : i32
    return %c0_i32, %c0_i32_0 : i32, i32
  }
  func.func @transform_5(%arg0: i32) -> (i32, i32) {
    %c0_i32 = arith.constant 0 : i32
    %c0_i32_0 = arith.constant 0 : i32
    return %arg0, %c0_i32 : i32, i32
  }
}

</mosaic_0001>

<llo_original>
// kernel: tpu_custom_call.1
$region0: #{tpu_custom_call.1}
  #allocation0 [shape = 'u32[]', space=smem, size = 0x4, offset = 0x4, fixed_abs, tag = 'smem constant byte address 0x4 - core index']
  #allocation1 [shape = 'u32[72,128]{1,0:T(1,128)}', space=vmem, size = 0x9000, scoped, tag = 'internal scratch']
  %s0 = inlined_call_operand.vmem [shape: f32[128,8], index: 0, kind: input, shape index: {}]
  %s1 = inlined_call_operand.vmem [shape: f32[8,128], index: 1, kind: input, shape index: {}]
  %s2 = inlined_call_operand.vmem [shape: f32[1,128], index: 2, kind: input, shape index: {}]
  %s3 = inlined_call_operand.vmem [shape: f32[128,128], index: 3, kind: input, shape index: {}]
  %s4 = inlined_call_operand.vmem [shape: f32[1,128], index: 4, kind: input, shape index: {}]
  %s5 = inlined_call_operand.hbm [shape: f32[128,128], index: 5, kind: output, shape index: {}]
  %s6 = sld [smem:[#allocation0]]
  $region53: #{tpu_custom_call.1} parent=0
    _
  %s8 = ssub.s32 1, %s6
  %s9 = scalar_select 0, %s8, %s6
  $region1: #{tpu_custom_call.1} parent=0
    #allocation2 [shape = 'u8[65536]{0}', space=vmem, size = 0x10000, scoped, tag = 'output window, operand 0']
    #allocation3 [shape = 's32[2]{0}', space=sflag, size = 0x8, scoped, tag = 'scoped memory for tpu_custom_call.1']
    %10 = vsyncpa [#allocation3], 0
    %s11 = scalar_lea.sflag [#allocation3], 1
    %12 = vsyncpa %s11, 0
    loop: start=0, step=1, limit=4
    $region2: #{tpu_custom_call.1} parent=1 // loop_pre_header
      _
    $region3: #{tpu_custom_call.1} parent=1 // loop_header
      %s14 = sphi 0, %s18
      %p15 = scmp.ge.s32.totalorder %s14, 4
      %s24 = sphi 0, %s26
      %s27 = sphi 0, %s24
      %s28 = sphi 0, %s27
      %s44 = sphi 0, %s28
      %s48 = sphi 0, %s48
      %s50 = sphi 0, %s48
      %s51 = sphi 0, %s50
      %s65 = sphi 0, %s51
      %s69 = sphi 0, %s69
      %s71 = sphi 0, %s69
      %s72 = sphi 0, %s71
      %s86 = sphi 0, %s72
      %s90 = sphi 0, %s90
      %s92 = sphi 0, %s90
      %s93 = sphi 0, %s92
      %s107 = sphi 0, %s93
      %s111 = sphi 0, %s111
      %s113 = sphi 0, %s111
      %s114 = sphi 0, %s113
      %s128 = sphi 0, %s114
      %s134 = sphi 0, %s136
      %s137 = sphi 0, %s134
      %s138 = sphi 0, %s137
      %s154 = sphi 0, %s138
    $region4: #{tpu_custom_call.1} parent=1 // loop_header_branch
      %17 = sbr.rel (%p15) target = $region8
    $region5: #{tpu_custom_call.1} parent=1 // loop_body
      %s19 = ssub.s32 %s14, 1
      %s20 = ssub.s32 %s14, 2
      %s21 = sadd.s32 %s14, 1
      %s22 = ssub.s32 %s14, %s21
      %p23 = scmp.eq.s32.totalorder %s22, 0
      %s25 = sadd.s32 %s24, 1
      %s26 = scalar_select %p23, %s24, %s25
      %p29 = pneg %p23
      %p30 = scmp.eq.s32.totalorder %s14, 1
      %p31 = por %p29, %p30
      %p32 = scmp.ne.s32.totalorder %s24, %s27
      %p33 = scmp.eq.s32.totalorder %s14, 0
      %p34 = por %p32, %p33
      %p35 = scmp.ne.s32.totalorder %s24, %s27
      %p36 = scmp.eq.s32.totalorder %s19, 1
      %p37 = por %p35, %p36
      %p38 = scmp.ne.s32.totalorder %s27, %s28
      %p39 = scmp.eq.s32.totalorder %s19, 0
      %p40 = por %p38, %p39
      %p41 = scmp.ne.s32.totalorder %s27, %s28
      %p42 = scmp.eq.s32.totalorder %s20, 1
      %p43 = por %p41, %p42
      %p45 = scmp.ne.s32.totalorder %s28, %s44
      %p46 = scmp.eq.s32.totalorder %s20, 0
      %p47 = por %p45, %p46
      %s49 = sadd.s32 %s48, 1
      %p52 = scmp.eq.s32.totalorder %s14, 1
      %p53 = scmp.ne.s32.totalorder %s48, %s50
      %p54 = scmp.eq.s32.totalorder %s14, 0
      %p55 = por %p53, %p54
      %p56 = scmp.ne.s32.totalorder %s48, %s50
      %p57 = scmp.eq.s32.totalorder %s19, 1
      %p58 = por %p56, %p57
      %p59 = scmp.ne.s32.totalorder %s50, %s51
      %p60 = scmp.eq.s32.totalorder %s19, 0
      %p61 = por %p59, %p60
      %p62 = scmp.ne.s32.totalorder %s50, %s51
      %p63 = scmp.eq.s32.totalorder %s20, 1
      %p64 = por %p62, %p63
      %p66 = scmp.ne.s32.totalorder %s51, %s65
      %p67 = scmp.eq.s32.totalorder %s20, 0
      %p68 = por %p66, %p67
      %s70 = sadd.s32 %s69, 1
      %p73 = scmp.eq.s32.totalorder %s14, 1
      %p74 = scmp.ne.s32.totalorder %s69, %s71
      %p75 = scmp.eq.s32.totalorder %s14, 0
      %p76 = por %p74, %p75
      %p77 = scmp.ne.s32.totalorder %s69, %s71
      %p78 = scmp.eq.s32.totalorder %s19, 1
      %p79 = por %p77, %p78
      %p80 = scmp.ne.s32.totalorder %s71, %s72
      %p81 = scmp.eq.s32.totalorder %s19, 0
      %p82 = por %p80, %p81
      %p83 = scmp.ne.s32.totalorder %s71, %s72
      %p84 = scmp.eq.s32.totalorder %s20, 1
      %p85 = por %p83, %p84
      %p87 = scmp.ne.s32.totalorder %s72, %s86
      %p88 = scmp.eq.s32.totalorder %s20, 0
      %p89 = por %p87, %p88
      %s91 = sadd.s32 %s90, 1
      %p94 = scmp.eq.s32.totalorder %s14, 1
      %p95 = scmp.ne.s32.totalorder %s90, %s92
      %p96 = scmp.eq.s32.totalorder %s14, 0
      %p97 = por %p95, %p96
      %p98 = scmp.ne.s32.totalorder %s90, %s92
      %p99 = scmp.eq.s32.totalorder %s19, 1
      %p100 = por %p98, %p99
      %p101 = scmp.ne.s32.totalorder %s92, %s93
      %p102 = scmp.eq.s32.totalorder %s19, 0
      %p103 = por %p101, %p102
      %p104 = scmp.ne.s32.totalorder %s92, %s93
      %p105 = scmp.eq.s32.totalorder %s20, 1
      %p106 = por %p104, %p105
      %p108 = scmp.ne.s32.totalorder %s93, %s107
      %p109 = scmp.eq.s32.totalorder %s20, 0
      %p110 = por %p108, %p109
      %s112 = sadd.s32 %s111, 1
      %p115 = scmp.eq.s32.totalorder %s14, 1
      %p116 = scmp.ne.s32.totalorder %s111, %s113
      %p117 = scmp.eq.s32.totalorder %s14, 0
      %p118 = por %p116, %p117
      %p119 = scmp.ne.s32.totalorder %s111, %s113
      %p120 = scmp.eq.s32.totalorder %s19, 1
      %p121 = por %p119, %p120
      %p122 = scmp.ne.s32.totalorder %s113, %s114
      %p123 = scmp.eq.s32.totalorder %s19, 0
      %p124 = por %p122, %p123
      %p125 = scmp.ne.s32.totalorder %s113, %s114
      %p126 = scmp.eq.s32.totalorder %s20, 1
      %p127 = por %p125, %p126
      %p129 = scmp.ne.s32.totalorder %s114, %s128
      %p130 = scmp.eq.s32.totalorder %s20, 0
      %p131 = por %p129, %p130
      %s132 = ssub.s32 %s14, %s21
      %p133 = scmp.eq.s32.totalorder %s132, 0
      %s135 = sadd.s32 %s134, 1
      %s136 = scalar_select %p133, %s134, %s135
      %p139 = pneg %p133
      %p140 = scmp.eq.s32.totalorder %s14, 1
      %p141 = por %p139, %p140
      %p142 = scmp.ne.s32.totalorder %s134, %s137
      %p143 = scmp.eq.s32.totalorder %s14, 0
      %p144 = por %p142, %p143
      %p145 = scmp.ne.s32.totalorder %s134, %s137
      %p146 = scmp.eq.s32.totalorder %s19, 1
      %p147 = por %p145, %p146
      %p148 = scmp.ne.s32.totalorder %s137, %s138
      %p149 = scmp.eq.s32.totalorder %s19, 0
      %p150 = por %p148, %p149
      %p151 = scmp.ne.s32.totalorder %s137, %s138
      %p152 = scmp.eq.s32.totalorder %s20, 1
      %p153 = por %p151, %p152
      %p155 = scmp.ne.s32.totalorder %s138, %s154
      %p156 = scmp.eq.s32.totalorder %s20, 0
      %p157 = por %p155, %p156
      %p158 = scmp.le.s32.totalorder 1, %s14
      %p159 = scmp.lt.s32.totalorder %s14, 3
      %p160 = pnand %p158, %p159
      %p161 = pneg %p160
      // Predicated region
      $region9: #{tpu_custom_call.1} parent=5 // pred_check
        _
      $region10: #{tpu_custom_call.1} parent=5 // pred_check_branch
        %163 = sbr.rel (%p160) target = $region12
      $region11: #{tpu_custom_call.1} parent=5 // pred_region
        %s164 = ssub.s32 %s14, 1
        // Predicated region
        $region13: #{tpu_custom_call.1} parent=11 // pred_check
          %p165 = pneg %p61
        $region14: #{tpu_custom_call.1} parent=11 // pred_check_branch
          %167 = sbr.rel (%p165) target = $region16
        $region15: #{tpu_custom_call.1} parent=11 // pred_region
          _
        $region16: #{tpu_custom_call.1} parent=11 // pred_fallthru
          _
        // Predicated region
        $region17: #{tpu_custom_call.1} parent=11 // pred_check
          %p168 = pneg %p82
        $region18: #{tpu_custom_call.1} parent=11 // pred_check_branch
          %170 = sbr.rel (%p168) target = $region20
        $region19: #{tpu_custom_call.1} parent=11 // pred_region
          _
        $region20: #{tpu_custom_call.1} parent=11 // pred_fallthru
          _
        // Predicated region
        $region21: #{tpu_custom_call.1} parent=11 // pred_check
          %p171 = pneg %p103
        $region22: #{tpu_custom_call.1} parent=11 // pred_check_branch
          %173 = sbr.rel (%p171) target = $region24
        $region23: #{tpu_custom_call.1} parent=11 // pred_region
          _
        $region24: #{tpu_custom_call.1} parent=11 // pred_fallthru
          _
        // Predicated region
        $region25: #{tpu_custom_call.1} parent=11 // pred_check
          %p174 = pneg %p124
        $region26: #{tpu_custom_call.1} parent=11 // pred_check_branch
          %176 = sbr.rel (%p174) target = $region28
        $region27: #{tpu_custom_call.1} parent=11 // pred_region
          _
        $region28: #{tpu_custom_call.1} parent=11 // pred_fallthru
          _
      $region12: #{tpu_custom_call.1} parent=5 // pred_fallthru
        _
      %p177 = scmp.lt.s32.totalorder %s14, 2
      // Predicated region
      $region29: #{tpu_custom_call.1} parent=5 // pred_check
        %p178 = pneg %p177
      $region30: #{tpu_custom_call.1} parent=5 // pred_check_branch
        %180 = sbr.rel (%p178) target = $region32
      $region31: #{tpu_custom_call.1} parent=5 // pred_region
        // Predicated region
        $region33: #{tpu_custom_call.1} parent=31 // pred_check
          %p181 = pneg %p34
        $region34: #{tpu_custom_call.1} parent=31 // pred_check_branch
          %183 = sbr.rel (%p181) target = $region36
        $region35: #{tpu_custom_call.1} parent=31 // pred_region
          %s184 = smul.u32 8, %s14
          %p185 = scmp.lt.s32.totalorder %s184, 15
          %s186 = scalar_select %p185, %s184, 15
          %s187 = smul.addr %s186, 8
          %s188 = scalar_lea.vmem %s0, %s187
          %s189 = smul.u32 8, %s14
        $region36: #{tpu_custom_call.1} parent=31 // pred_fallthru
          _
      $region32: #{tpu_custom_call.1} parent=5 // pred_fallthru
        _
      %p190 = scmp.le.s32.totalorder 1, %s14
      %p191 = scmp.lt.s32.totalorder %s14, 3
      %p192 = pnand %p190, %p191
      %p193 = pneg %p192
      // Predicated region
      $region37: #{tpu_custom_call.1} parent=5 // pred_check
        _
      $region38: #{tpu_custom_call.1} parent=5 // pred_check_branch
        %195 = sbr.rel (%p192) target = $region40
      $region39: #{tpu_custom_call.1} parent=5 // pred_region
        %s196 = ssub.s32 %s14, 1
        %s197 = smul.u32 8, %s19
        %p198 = scmp.lt.s32.totalorder %s197, 15
        %s199 = scalar_select %p198, %s197, 15
        %s200 = smul.addr %s199, 8
        %s201 = scalar_lea.vmem %s0, %s200
        %p202 = pneg %p40
        %p203 = pneg %p37
        %p204 = pneg %p61
        %p205 = pneg %p58
        %p206 = pneg %p82
        %p207 = pneg %p79
        %p208 = pneg %p103
        %p209 = pneg %p100
        %p210 = pneg %p124
        %p211 = pneg %p121
        %p212 = pneg %p150
        %p213 = pneg %p147
        %s214 = sand.u32 %s137, 1
        %s215 = scalar_lea.sflag [#allocation3], %s214
        %s216 = sand.u32 %s137, 1
        %s217 = smul.addr %s216, 64
        %s218 = scalar_lea.vmem [#allocation2], %s217
        %s219 = smul.u32 8, %s19
        %p220 = scmp.lt.s32.totalorder %s219, 15
        %s221 = scalar_select %p220, %s219, 15
        %s222 = smul.addr %s221, 8
        %s223 = scalar_lea.vmem %s0, %s222
        %s224 = smul.u32 8, %s19
        %s225 = smul.u32 8, %s19
        %v226 = vld [vmem:[%s223] sm:$0xff]
        %v227 = vld [vmem:[%s223 + $0x8] sm:$0xff]
        %v228 = vld [vmem:[%s223 + $0x10] sm:$0xff]
        %v229 = vld [vmem:[%s223 + $0x18] sm:$0xff]
        %v230 = vld [vmem:[%s223 + $0x20] sm:$0xff]
        %v231 = vld [vmem:[%s223 + $0x28] sm:$0xff]
        %v232 = vld [vmem:[%s223 + $0x30] sm:$0xff]
        %v233 = vld [vmem:[%s223 + $0x38] sm:$0xff]
        %v234 = vld [vmem:[%s1] sm:$0xff]
        %v235 = vld [vmem:[%s2] sm:$0x1]
        %v237 = vperm.slane %v235, 0
        %vm239 = vcmask 64512
        %v241 = vsel %vm239, %v226, 0
        %v244 = vsel %vm239, %v227, 0
        %v247 = vsel %vm239, %v228, 0
        %v250 = vsel %vm239, %v229, 0
        %v253 = vsel %vm239, %v230, 0
        %v256 = vsel %vm239, %v231, 0
        %v259 = vsel %vm239, %v232, 0
        %v262 = vsel %vm239, %v233, 0
        %264 = vmatpush.msra.mxu0 0.0
        %265 = vmatpush.msra.mxu0 0.0
        %266 = vmatpush.msra.mxu0 0.0
        %267 = vmatpush.msra.mxu0 0.0
        %268 = vmatpush.msra.mxu0 0.0
        %269 = vmatpush.msra.mxu0 0.0
        %270 = vmatpush.msra.mxu0 0.0
        %271 = vmatpush.msra.mxu0 0.0
        %272 = vmatpush.msra.mxu0 0.0
        %273 = vmatpush.msra.mxu0 0.0
        %274 = vmatpush.msra.mxu0 0.0
        %275 = vmatpush.msra.mxu0 0.0
        %276 = vmatpush.msra.mxu0 0.0
        %277 = vmatpush.msra.mxu0 0.0
        %278 = vmatpush.msra.mxu0 0.0
        %279 = vmatpush.msra.mxu0 %v234
        %280 = vmatmul.f32.gmra.mxu0 %v241
        %v281 = vpop.f32.mrf.mxu0
        %v282 = vadd.f32 %v237, %v281
        %283 = vmatmul.f32.gmra.mxu0 %v244
        %v284 = vpop.f32.mrf.mxu0
        %v285 = vadd.f32 %v237, %v284
        %286 = vmatmul.f32.gmra.mxu0 %v247
        %v287 = vpop.f32.mrf.mxu0
        %v288 = vadd.f32 %v237, %v287
        %289 = vmatmul.f32.gmra.mxu0 %v250
        %v290 = vpop.f32.mrf.mxu0
        %v291 = vadd.f32 %v237, %v290
        %292 = vmatmul.f32.gmra.mxu0 %v253
        %v293 = vpop.f32.mrf.mxu0
        %v294 = vadd.f32 %v237, %v293
        %295 = vmatmul.f32.gmra.mxu0 %v256
        %v296 = vpop.f32.mrf.mxu0
        %v297 = vadd.f32 %v237, %v296
        %298 = vmatmul.f32.gmra.mxu0 %v259
        %v299 = vpop.f32.mrf.mxu0
        %v300 = vadd.f32 %v237, %v299
        %301 = vmatmul.f32.gmra.mxu0 %v262
        %v302 = vpop.f32.mrf.mxu0
        %v303 = vadd.f32 %v237, %v302
        %304 = vdwg.mxu0
        %v305 = vmax.f32 %v282, 0.0
        %v306 = vmax.f32 %v285, 0.0
        %v307 = vmax.f32 %v288, 0.0
        %v308 = vmax.f32 %v291, 0.0
        %v309 = vmax.f32 %v294, 0.0
        %v310 = vmax.f32 %v297, 0.0
        %v311 = vmax.f32 %v300, 0.0
        %v312 = vmax.f32 %v303, 0.0
        %v313 = vld [vmem:[%s3] sm:$0xff]
        %v314 = vld [vmem:[%s3 + $0x8] sm:$0xff]
        %v315 = vld [vmem:[%s3 + $0x10] sm:$0xff]
        %v316 = vld [vmem:[%s3 + $0x18] sm:$0xff]
        %v317 = vld [vmem:[%s3 + $0x20] sm:$0xff]
        %v318 = vld [vmem:[%s3 + $0x28] sm:$0xff]
        %v319 = vld [vmem:[%s3 + $0x30] sm:$0xff]
        %v320 = vld [vmem:[%s3 + $0x38] sm:$0xff]
        %v321 = vld [vmem:[%s3 + $0x40] sm:$0xff]
        %v322 = vld [vmem:[%s3 + $0x48] sm:$0xff]
        %v323 = vld [vmem:[%s3 + $0x50] sm:$0xff]
        %v324 = vld [vmem:[%s3 + $0x58] sm:$0xff]
        %v325 = vld [vmem:[%s3 + $0x60] sm:$0xff]
        %v326 = vld [vmem:[%s3 + $0x68] sm:$0xff]
        %v327 = vld [vmem:[%s3 + $0x70] sm:$0xff]
        %v328 = vld [vmem:[%s3 + $0x78] sm:$0xff]
        %v329 = vld [vmem:[%s4] sm:$0x1]
        %v331 = vperm.slane %v329, 0
        %333 = vmatpush.msra.mxu0 %v328
        %334 = vmatpush.msra.mxu0 %v327
        %335 = vmatpush.msra.mxu0 %v326
        %336 = vmatpush.msra.mxu0 %v325
        %337 = vmatpush.msra.mxu0 %v324
        %338 = vmatpush.msra.mxu0 %v323
        %339 = vmatpush.msra.mxu0 %v322
        %340 = vmatpush.msra.mxu0 %v321
        %341 = vmatpush.msra.mxu0 %v320
        %342 = vmatpush.msra.mxu0 %v319
        %343 = vmatpush.msra.mxu0 %v318
        %344 = vmatpush.msra.mxu0 %v317
        %345 = vmatpush.msra.mxu0 %v316
        %346 = vmatpush.msra.mxu0 %v315
        %347 = vmatpush.msra.mxu0 %v314
        %348 = vmatpush.msra.mxu0 %v313
        %349 = vmatmul.f32.gmra.mxu0 %v305
        %v350 = vpop.f32.mrf.mxu0
        %v351 = vadd.f32 %v331, %v350
        %352 = vmatmul.f32.gmra.mxu0 %v306
        %v353 = vpop.f32.mrf.mxu0
        %v354 = vadd.f32 %v331, %v353
        %355 = vmatmul.f32.gmra.mxu0 %v307
        %v356 = vpop.f32.mrf.mxu0
        %v357 = vadd.f32 %v331, %v356
        %358 = vmatmul.f32.gmra.mxu0 %v308
        %v359 = vpop.f32.mrf.mxu0
        %v360 = vadd.f32 %v331, %v359
        %361 = vmatmul.f32.gmra.mxu0 %v309
        %v362 = vpop.f32.mrf.mxu0
        %v363 = vadd.f32 %v331, %v362
        %364 = vmatmul.f32.gmra.mxu0 %v310
        %v365 = vpop.f32.mrf.mxu0
        %v366 = vadd.f32 %v331, %v365
        %367 = vmatmul.f32.gmra.mxu0 %v311
        %v368 = vpop.f32.mrf.mxu0
        %v369 = vadd.f32 %v331, %v368
        %370 = vmatmul.f32.gmra.mxu0 %v312
        %v371 = vpop.f32.mrf.mxu0
        %v372 = vadd.f32 %v331, %v371
        %373 = vdwg.mxu0
        %374 = vst [vmem:[%s218] sm:$0xff] %v351
        %375 = vst [vmem:[%s218 + $0x8] sm:$0xff] %v354
        %376 = vst [vmem:[%s218 + $0x10] sm:$0xff] %v357
        %377 = vst [vmem:[%s218 + $0x18] sm:$0xff] %v360
        %378 = vst [vmem:[%s218 + $0x20] sm:$0xff] %v363
        %379 = vst [vmem:[%s218 + $0x28] sm:$0xff] %v366
        %380 = vst [vmem:[%s218 + $0x30] sm:$0xff] %v369
        %381 = vst [vmem:[%s218 + $0x38] sm:$0xff] %v372
        %s382 = sand.u32 %s137, 1
        %s383 = scalar_lea.sflag [#allocation3], %s382
        %s384 = sand.u32 %s137, 1
        %s385 = smul.addr %s384, 64
        %s386 = scalar_lea.vmem [#allocation2], %s385
        // Predicated region
        $region41: #{tpu_custom_call.1} parent=39 // pred_check
          %p387 = pneg %p147
        $region42: #{tpu_custom_call.1} parent=39 // pred_check_branch
          %389 = sbr.rel (%p387) target = $region44
        $region43: #{tpu_custom_call.1} parent=39 // pred_region
          %s390 = smul.u32 8, %s19
          %392 = vsyncadd %s383, 0
          %s393 = smul.addr %s390, 8
          %s394 = scalar_lea.hbm %s5, %s393
          %s395 = sshll.u32 %s386, 4
          %s396 = int_to_ptr.vmem [resolvable:$true] %s395
          %s397 = sshll.u32 %s394, 4
          %s398 = int_to_ptr.hbm [resolvable:$true] %s397
          %403 = dma.vmem_to_hbm [thread:$0]  %s396, 1024, %s398, %s383, 128, 128, 8
        $region44: #{tpu_custom_call.1} parent=39 // pred_fallthru
          _
      $region40: #{tpu_custom_call.1} parent=5 // pred_fallthru
        _
      %p404 = scmp.le.s32.totalorder 2, %s14
      // Predicated region
      $region45: #{tpu_custom_call.1} parent=5 // pred_check
        %p405 = pneg %p404
      $region46: #{tpu_custom_call.1} parent=5 // pred_check_branch
        %407 = sbr.rel (%p405) target = $region48
      $region47: #{tpu_custom_call.1} parent=5 // pred_region
        %s408 = ssub.s32 %s14, 2
        // Predicated region
        $region49: #{tpu_custom_call.1} parent=47 // pred_check
          %p409 = pneg %p153
        $region50: #{tpu_custom_call.1} parent=47 // pred_check_branch
          %411 = sbr.rel (%p409) target = $region52
        $region51: #{tpu_custom_call.1} parent=47 // pred_region
          %s412 = sand.u32 %s138, 1
          %s413 = scalar_lea.sflag [#allocation3], %s412
          %s414 = sand.u32 %s138, 1
          %s415 = smul.addr %s414, 64
          %s416 = scalar_lea.vmem [#allocation2], %s415
          %418 = dma.done %s413, 1024
        $region52: #{tpu_custom_call.1} parent=47 // pred_fallthru
          _
      $region48: #{tpu_custom_call.1} parent=5 // pred_fallthru
        _
    $region6: #{tpu_custom_call.1} parent=1 // loop_footer
      %s18 = sadd.s32 1, %s14
    $region7: #{tpu_custom_call.1} parent=1 // loop_footer_branch
      %13 = sbr.rel target = $region3
    $region8: #{tpu_custom_call.1} parent=1 // loop_exit
      _
    %419 = vsyncpa [#allocation3], 1
    %s420 = scalar_lea.sflag [#allocation3], 1
    %421 = vsyncpa %s420, 1

</llo_original>
